<compile_context>
chip_gen: v6e
topology: v6e:2x2x1
jax: 0.10.0
libtpu: 0.0.40
codegen_flags: <defaults>
</compile_context>

<pallas_src>
import jax
import jax.numpy as jnp
from jax.experimental import pallas as pl
from jax.experimental.pallas import tpu as pltpu

HIDDEN = 128  # fixed by the PyTorch module (nn.Linear(input_dim, 128))


def _fusion_kernel(x1_ref, x2_ref, w1a_ref, w1b_ref, b1_ref, w2_ref, b2_ref,
                   out_ref):
    # x1:  [TB, D1] f32          x2:  [TB, D2] f32
    # w1a: [D1, H*128] f32       w1b: [D2, H*128] f32   (first layer, split+T)
    # b1:  [1, H*128]  f32
    # w2:  [H*128, H]  f32       (block-diagonal second-layer weights)
    # b2:  [1, H]      f32
    # out: [TB, D]     f32       (D = D1 + D2)
    x1 = x1_ref[...]
    x2 = x2_ref[...]
    d1 = x1.shape[1]

    # First linear + tanh for all heads at once, concat fused into two matmuls
    # (no lane-axis concatenate, no bf16 repack):  [TB, H*128]
    hidden = jnp.tanh(
        jnp.dot(x1, w1a_ref[...], preferred_element_type=jnp.float32)
        + jnp.dot(x2, w1b_ref[...], preferred_element_type=jnp.float32)
        + b1_ref[...]
    )

    # Second linear (per-head scalar score) via block-diagonal matmul: [TB, H]
    scores = (
        jnp.dot(hidden, w2_ref[...], preferred_element_type=jnp.float32)
        + b2_ref[...]
    )

    # Softmax over heads (dim=1 in the PyTorch module), exact divide.
    m = jnp.max(scores, axis=1, keepdims=True)
    e = jnp.exp(scores - m)
    attn = e / jnp.sum(e, axis=1, keepdims=True)          # [TB, H]

    # sum_h attn[b,h] * comb[b,:]  ==  comb[b,:] * sum_h attn[b,h]
    # (factored form -> no [TB, H, D] broadcast; two slice stores avoid
    #  re-materializing `combined`).
    scale = jnp.sum(attn, axis=1, keepdims=True)          # [TB, 1]
    out_ref[:, :d1] = (x1 * scale).astype(out_ref.dtype)
    out_ref[:, d1:] = (x2 * scale).astype(out_ref.dtype)


def multi_head_attention_fusion(x1, x2, params, *, block_b=2048):
    w1a, w1b = params["w1a"], params["w1b"]
    b1, w2bd, b2 = params["b1"], params["w2bd"], params["b2"]
    B, D1 = x1.shape
    B2, D2 = x2.shape
    assert B == B2
    D = D1 + D2
    HH = w1a.shape[1]      # H * 128
    H = b2.shape[1]

    def _round_up(v, m):
        return ((v + m - 1) // m) * m

    # Batch tile: large (step-overhead amortization) but capped for VMEM; for
    # mid-size batches pick ~B/2 so the grid has >= 2 steps and both v7x
    # TensorCores get work.  Raise block_b to 4096-8192 on v5e/v6e (128 MiB
    # VMEM); keep <= ~2048-4096 on v7x (64 MiB VMEM, 8x lane padding at D=16).
    if B <= 8:
        tb = B
    else:
        tb = min(block_b, _round_up(pl.cdiv(B, 2), 8))
    grid = (pl.cdiv(B, tb),)

    out = pl.pallas_call(
        _fusion_kernel,
        out_shape=jax.ShapeDtypeStruct((B, D), x1.dtype),
        grid=grid,
        in_specs=[
            pl.BlockSpec((tb, D1), lambda i: (i, 0)),     # x1 tile
            pl.BlockSpec((tb, D2), lambda i: (i, 0)),     # x2 tile
            pl.BlockSpec((D1, HH), lambda i: (0, 0)),     # w1a (VMEM-resident)
            pl.BlockSpec((D2, HH), lambda i: (0, 0)),     # w1b (VMEM-resident)
            pl.BlockSpec((1, HH), lambda i: (0, 0)),      # b1  (resident)
            pl.BlockSpec((HH, H), lambda i: (0, 0)),      # w2bd (resident)
            pl.BlockSpec((1, H), lambda i: (0, 0)),       # b2  (resident)
        ],
        out_specs=pl.BlockSpec((tb, D), lambda i: (i, 0)),
        compiler_params=pltpu.CompilerParams(
            dimension_semantics=("parallel",),            # megacore shard on v7x
            vmem_limit_bytes=48 * 1024 * 1024,
        ),
    )(x1, x2, w1a, w1b, b1, w2bd, b2)
    return out


def init_params(key, d1, d2, num_heads=4):
    """Deterministic PyTorch-style (uniform +-1/sqrt(fan_in)) init."""
    input_dim = d1 + d2
    keys = jax.random.split(key, 4 * num_heads)
    w1_list, b1_list, w2_list, b2_list = [], [], [], []
    bound1 = 1.0 / jnp.sqrt(input_dim)
    bound2 = 1.0 / jnp.sqrt(HIDDEN)
    for h in range(num_heads):
        k0, k1, k2, k3 = keys[4 * h: 4 * h + 4]
        w1_list.append(jax.random.uniform(k0, (HIDDEN, input_dim), jnp.float32,
                                          -bound1, bound1))
        b1_list.append(jax.random.uniform(k1, (HIDDEN,), jnp.float32,
                                          -bound1, bound1))
        w2_list.append(jax.random.uniform(k2, (1, HIDDEN), jnp.float32,
                                          -bound2, bound2))
        b2_list.append(jax.random.uniform(k3, (1,), jnp.float32,
                                          -bound2, bound2))

    # Pack for the kernel (all f32; weights are tiny and DMA'd once).
    w1_cat = jnp.concatenate(w1_list, axis=0)                 # [H*128, D]
    w1t = w1_cat.T                                             # [D, H*128]
    w1a = w1t[:d1, :]                                          # [D1, H*128]
    w1b = w1t[d1:, :]                                          # [D2, H*128]
    b1 = jnp.concatenate(b1_list, axis=0)[None, :]             # [1, H*128]

    # Block-diagonal second-layer weights: [H*128, H]
    w2bd = jnp.zeros((num_heads * HIDDEN, num_heads), jnp.float32)
    for h in range(num_heads):
        w2bd = w2bd.at[h * HIDDEN:(h + 1) * HIDDEN, h].set(w2_list[h][0])
    b2 = jnp.concatenate(b2_list, axis=0)[None, :]             # [1, H]

    raw = dict(w1=w1_list, b1_raw=b1_list, w2=w2_list, b2_raw=b2_list)
    return {"w1a": w1a, "w1b": w1b, "b1": b1, "w2bd": w2bd, "b2": b2,
            "_raw": raw}


def reference_forward(x1, x2, params):
    """Pure-JAX (full f32) replica of the PyTorch forward, for verification."""
    comb = jnp.concatenate([x1, x2], axis=1)                   # [B, D]
    raw = params["_raw"]
    scores = []
    for w1, b1, w2, b2 in zip(raw["w1"], raw["b1_raw"], raw["w2"], raw["b2_raw"]):
        h = jnp.tanh(comb @ w1.T + b1)
        s = h @ w2.T + b2                                      # [B, 1]
        scores.append(s[:, None, :])                           # [B, 1, 1]
    attn = jnp.concatenate(scores, axis=1)                     # [B, H, 1]
    attn = jax.nn.softmax(attn, axis=1)
    return jnp.sum(attn * comb[:, None, :], axis=1)            # [B, D]


if __name__ == "__main__":
    key = jax.random.PRNGKey(0)
    k_p, k_x1, k_x2 = jax.random.split(key, 3)

    B, D1, D2 = 8, 16, 16
    input_dim = D1 + D2          # 32
    num_heads = 4

    params = init_params(k_p, D1, D2, num_heads)
    x1 = jax.random.normal(k_x1, (B, D1), jnp.float32)
    x2 = jax.random.normal(k_x2, (B, D2), jnp.float32)

    out = multi_head_attention_fusion(x1, x2, params)
    out = jax.block_until_ready(out)

    ref = reference_forward(x1, x2, params)
    assert out.shape == (B, input_dim)
    # All-f32 compute with an exact softmax divide -> error is f32 rounding.
    assert jnp.allclose(out, ref, atol=1e-5, rtol=1e-5), "mismatch vs reference"

    print("KERNEL_OK")
</pallas_src>

<mosaic_0001>
module attributes {stable_mosaic.version = 11 : i64} {
  func.func @_fusion_kernel(%arg0: i32, %arg1: memref<8x16xf32, #tpu.memory_space<vmem>>, %arg2: memref<8x16xf32, #tpu.memory_space<vmem>>, %arg3: memref<16x512xf32, #tpu.memory_space<vmem>>, %arg4: memref<16x512xf32, #tpu.memory_space<vmem>>, %arg5: memref<1x512xf32, #tpu.memory_space<vmem>>, %arg6: memref<512x4xf32, #tpu.memory_space<vmem>>, %arg7: memref<1x4xf32, #tpu.memory_space<vmem>>, %arg8: memref<8x32xf32, #tpu.memory_space<vmem>>) attributes {dimension_semantics = [#tpu.dimension_semantics<parallel>], iteration_bounds = array<i64: 1>, scalar_prefetch = 0 : i64, scratch_operands = 0 : i64, tpu.core_type = #tpu.core_type<tc>, window_params = [{transform_indices = @transform_0, window_bounds = array<i64: 8, 16>}, {transform_indices = @transform_1, window_bounds = array<i64: 8, 16>}, {pipeline_mode = #tpu.pipeline_mode<synchronous>, transform_indices = @transform_2, window_bounds = array<i64: 16, 512>}, {pipeline_mode = #tpu.pipeline_mode<synchronous>, transform_indices = @transform_3, window_bounds = array<i64: 16, 512>}, {pipeline_mode = #tpu.pipeline_mode<synchronous>, transform_indices = @transform_4, window_bounds = array<i64: 1, 512>}, {pipeline_mode = #tpu.pipeline_mode<synchronous>, transform_indices = @transform_5, window_bounds = array<i64: 512, 4>}, {pipeline_mode = #tpu.pipeline_mode<synchronous>, transform_indices = @transform_6, window_bounds = array<i64: 1, 4>}, {transform_indices = @transform_7, window_bounds = array<i64: 8, 32>}]} {
    %c0 = arith.constant 0 : index
    %c0_0 = arith.constant 0 : index
    %0 = vector.load %arg1[%c0, %c0_0] : memref<8x16xf32, #tpu.memory_space<vmem>>, vector<8x16xf32>
    %c0_1 = arith.constant 0 : index
    %c0_2 = arith.constant 0 : index
    %1 = vector.load %arg2[%c0_1, %c0_2] : memref<8x16xf32, #tpu.memory_space<vmem>>, vector<8x16xf32>
    %c0_3 = arith.constant 0 : index
    %c0_4 = arith.constant 0 : index
    %2 = vector.load %arg3[%c0_3, %c0_4] : memref<16x512xf32, #tpu.memory_space<vmem>>, vector<16x512xf32>
    %cst = arith.constant dense<0.000000e+00> : vector<8x512xf32>
    %3 = tpu.matmul %0, %2, %cst {dimension_numbers = #tpu.dot_dimension_numbers<[1], [0], [0], [1], [0, 0, 1, 1], [], []>} : vector<8x16xf32>, vector<16x512xf32>, vector<8x512xf32> -> vector<8x512xf32>
    %c0_5 = arith.constant 0 : index
    %c0_6 = arith.constant 0 : index
    %4 = vector.load %arg4[%c0_5, %c0_6] : memref<16x512xf32, #tpu.memory_space<vmem>>, vector<16x512xf32>
    %cst_7 = arith.constant dense<0.000000e+00> : vector<8x512xf32>
    %5 = tpu.matmul %1, %4, %cst_7 {dimension_numbers = #tpu.dot_dimension_numbers<[1], [0], [0], [1], [0, 0, 1, 1], [], []>} : vector<8x16xf32>, vector<16x512xf32>, vector<8x512xf32> -> vector<8x512xf32>
    %6 = arith.addf %3, %5 : vector<8x512xf32>
    %c0_8 = arith.constant 0 : index
    %c0_9 = arith.constant 0 : index
    %7 = vector.load %arg5[%c0_8, %c0_9] : memref<1x512xf32, #tpu.memory_space<vmem>>, vector<1x512xf32>
    %8 = vector.broadcast %7 : vector<1x512xf32> to vector<8x512xf32>
    %9 = arith.addf %6, %8 : vector<8x512xf32>
    %10 = math.tanh %9 : vector<8x512xf32>
    %c0_10 = arith.constant 0 : index
    %c0_11 = arith.constant 0 : index
    %11 = vector.load %arg6[%c0_10, %c0_11] : memref<512x4xf32, #tpu.memory_space<vmem>>, vector<512x4xf32>
    %cst_12 = arith.constant dense<0.000000e+00> : vector<8x4xf32>
    %12 = tpu.matmul %10, %11, %cst_12 {dimension_numbers = #tpu.dot_dimension_numbers<[1], [0], [0], [1], [0, 0, 1, 1], [], []>} : vector<8x512xf32>, vector<512x4xf32>, vector<8x4xf32> -> vector<8x4xf32>
    %c0_13 = arith.constant 0 : index
    %c0_14 = arith.constant 0 : index
    %13 = vector.load %arg7[%c0_13, %c0_14] : memref<1x4xf32, #tpu.memory_space<vmem>>, vector<1x4xf32>
    %14 = vector.broadcast %13 : vector<1x4xf32> to vector<8x4xf32>
    %15 = arith.addf %12, %14 : vector<8x4xf32>
    %cst_15 = arith.constant dense<0xFF800000> : vector<8xf32>
    %16 = vector.multi_reduction <maximumf>, %15, %cst_15 [1] : vector<8x4xf32> to vector<8xf32>
    %17 = vector.shape_cast %16 : vector<8xf32> to vector<8x1xf32>
    %18 = vector.broadcast %17 : vector<8x1xf32> to vector<8x4xf32>
    %19 = arith.subf %15, %18 : vector<8x4xf32>
    %20 = math.exp %19 : vector<8x4xf32>
    %cst_16 = arith.constant dense<0.000000e+00> : vector<8xf32>
    %21 = vector.multi_reduction <add>, %20, %cst_16 [1] : vector<8x4xf32> to vector<8xf32>
    %22 = vector.shape_cast %21 : vector<8xf32> to vector<8x1xf32>
    %23 = vector.broadcast %22 : vector<8x1xf32> to vector<8x4xf32>
    %24 = arith.divf %20, %23 : vector<8x4xf32>
    %cst_17 = arith.constant dense<0.000000e+00> : vector<8xf32>
    %25 = vector.multi_reduction <add>, %24, %cst_17 [1] : vector<8x4xf32> to vector<8xf32>
    %26 = vector.shape_cast %25 : vector<8xf32> to vector<8x1xf32>
    %27 = vector.broadcast %26 : vector<8x1xf32> to vector<8x16xf32>
    %28 = arith.mulf %0, %27 : vector<8x16xf32>
    %c0_18 = arith.constant 0 : index
    %c0_19 = arith.constant 0 : index
    %29 = vector.load %arg8[%c0_18, %c0_19] : memref<8x32xf32, #tpu.memory_space<vmem>>, vector<8x16xf32>
    tpu.vector_store %arg8[%c0_18, %c0_19], %28 {strides = array<i32>} : memref<8x32xf32, #tpu.memory_space<vmem>>, vector<8x16xf32>,
    %30 = vector.broadcast %26 : vector<8x1xf32> to vector<8x16xf32>
    %31 = arith.mulf %1, %30 : vector<8x16xf32>
    %c0_20 = arith.constant 0 : index
    %c16 = arith.constant 16 : index
    %32 = vector.load %arg8[%c0_20, %c16] : memref<8x32xf32, #tpu.memory_space<vmem>>, vector<8x16xf32>
    tpu.vector_store %arg8[%c0_20, %c16], %31 {strides = array<i32>} : memref<8x32xf32, #tpu.memory_space<vmem>>, vector<8x16xf32>,
    return
  }
  func.func @transform_0(%arg0: i32) -> (i32, i32) {
    %c0_i32 = arith.constant 0 : i32
    %c0_i32_0 = arith.constant 0 : i32
    return %arg0, %c0_i32 : i32, i32
  }
  func.func @transform_1(%arg0: i32) -> (i32, i32) {
    %c0_i32 = arith.constant 0 : i32
    %c0_i32_0 = arith.constant 0 : i32
    return %arg0, %c0_i32 : i32, i32
  }
  func.func @transform_2(%arg0: i32) -> (i32, i32) {
    %c0_i32 = arith.constant 0 : i32
    %c0_i32_0 = arith.constant 0 : i32
    %c0_i32_1 = arith.constant 0 : i32
    return %c0_i32, %c0_i32_0 : i32, i32
  }
  func.func @transform_3(%arg0: i32) -> (i32, i32) {
    %c0_i32 = arith.constant 0 : i32
    %c0_i32_0 = arith.constant 0 : i32
    %c0_i32_1 = arith.constant 0 : i32
    return %c0_i32, %c0_i32_0 : i32, i32
  }
  func.func @transform_4(%arg0: i32) -> (i32, i32) {
    %c0_i32 = arith.constant 0 : i32
    %c0_i32_0 = arith.constant 0 : i32
    %c0_i32_1 = arith.constant 0 : i32
    return %c0_i32, %c0_i32_0 : i32, i32
  }
  func.func @transform_5(%arg0: i32) -> (i32, i32) {
    %c0_i32 = arith.constant 0 : i32
    %c0_i32_0 = arith.constant 0 : i32
    %c0_i32_1 = arith.constant 0 : i32
    return %c0_i32, %c0_i32_0 : i32, i32
  }
  func.func @transform_6(%arg0: i32) -> (i32, i32) {
    %c0_i32 = arith.constant 0 : i32
    %c0_i32_0 = arith.constant 0 : i32
    %c0_i32_1 = arith.constant 0 : i32
    return %c0_i32, %c0_i32_0 : i32, i32
  }
  func.func @transform_7(%arg0: i32) -> (i32, i32) {
    %c0_i32 = arith.constant 0 : i32
    %c0_i32_0 = arith.constant 0 : i32
    return %arg0, %c0_i32 : i32, i32
  }
}

</mosaic_0001>

<llo_original>
// kernel: tpu_custom_call.1
$region0: #{tpu_custom_call.1}
  #allocation0 [shape = 'u32[]', space=smem, size = 0x4, offset = 0x4, fixed_abs, tag = 'smem constant byte address 0x4 - core index']
  #allocation1 [shape = 'u32[144,128]{1,0:T(1,128)}', space=vmem, size = 0x12000, scoped, tag = 'internal scratch']
  %s0 = inlined_call_operand.vmem [shape: f32[8,16], index: 0, kind: input, shape index: {}]
  %s1 = inlined_call_operand.vmem [shape: f32[8,16], index: 1, kind: input, shape index: {}]
  %s2 = inlined_call_operand.vmem [shape: f32[16,512], index: 2, kind: input, shape index: {}]
  %s3 = inlined_call_operand.vmem [shape: f32[16,512], index: 3, kind: input, shape index: {}]
  %s4 = inlined_call_operand.vmem [shape: f32[1,512], index: 4, kind: input, shape index: {}]
  %s5 = inlined_call_operand.vmem [shape: f32[512,4], index: 5, kind: input, shape index: {}]
  %s6 = inlined_call_operand.vmem [shape: f32[1,4], index: 6, kind: input, shape index: {}]
  %s7 = inlined_call_operand.hbm [shape: f32[8,32], index: 7, kind: output, shape index: {}]
  %s8 = sld [smem:[#allocation0]]
  $region38: #{tpu_custom_call.1} parent=0
    _
  %s10 = ssub.s32 1, %s8
  %s11 = scalar_select 0, %s10, %s8
  $region1: #{tpu_custom_call.1} parent=0
    #allocation2 [shape = 'u8[4096]{0}', space=vmem, size = 0x1000, scoped, tag = 'output window, operand 0, single buffered']
    #allocation3 [shape = 's32[1]{0}', space=sflag, size = 0x4, scoped, tag = 'scoped memory for tpu_custom_call.1']
    %12 = vsyncpa [#allocation3], 0
    // Predicated region
    $region2: #{tpu_custom_call.1} parent=1 // pred_check
      _
    $region3: #{tpu_custom_call.1} parent=1 // pred_check_branch
      %14 = sbr.rel (0) target = $region5
    $region4: #{tpu_custom_call.1} parent=1 // pred_region
      _
    $region5: #{tpu_custom_call.1} parent=1 // pred_fallthru
      _
    // Predicated region
    $region6: #{tpu_custom_call.1} parent=1 // pred_check
      _
    $region7: #{tpu_custom_call.1} parent=1 // pred_check_branch
      %16 = sbr.rel (0) target = $region9
    $region8: #{tpu_custom_call.1} parent=1 // pred_region
      _
    $region9: #{tpu_custom_call.1} parent=1 // pred_fallthru
      _
    // Predicated region
    $region10: #{tpu_custom_call.1} parent=1 // pred_check
      _
    $region11: #{tpu_custom_call.1} parent=1 // pred_check_branch
      %18 = sbr.rel (0) target = $region13
    $region12: #{tpu_custom_call.1} parent=1 // pred_region
      _
    $region13: #{tpu_custom_call.1} parent=1 // pred_fallthru
      _
    // Predicated region
    $region14: #{tpu_custom_call.1} parent=1 // pred_check
      _
    $region15: #{tpu_custom_call.1} parent=1 // pred_check_branch
      %20 = sbr.rel (0) target = $region17
    $region16: #{tpu_custom_call.1} parent=1 // pred_region
      _
    $region17: #{tpu_custom_call.1} parent=1 // pred_fallthru
      _
    // Predicated region
    $region18: #{tpu_custom_call.1} parent=1 // pred_check
      _
    $region19: #{tpu_custom_call.1} parent=1 // pred_check_branch
      %22 = sbr.rel (0) target = $region21
    $region20: #{tpu_custom_call.1} parent=1 // pred_region
      _
    $region21: #{tpu_custom_call.1} parent=1 // pred_fallthru
      _
    // Predicated region
    $region22: #{tpu_custom_call.1} parent=1 // pred_check
      _
    $region23: #{tpu_custom_call.1} parent=1 // pred_check_branch
      %24 = sbr.rel (0) target = $region25
    $region24: #{tpu_custom_call.1} parent=1 // pred_region
      _
    $region25: #{tpu_custom_call.1} parent=1 // pred_fallthru
      _
    // Predicated region
    $region26: #{tpu_custom_call.1} parent=1 // pred_check
      _
    $region27: #{tpu_custom_call.1} parent=1 // pred_check_branch
      %26 = sbr.rel (0) target = $region29
    $region28: #{tpu_custom_call.1} parent=1 // pred_region
      _
    $region29: #{tpu_custom_call.1} parent=1 // pred_fallthru
      _
    %v27 = vld [vmem:[%s0] sm:$0xff]
    %v28 = vld [vmem:[%s1] sm:$0xff]
    %v29 = vld [vmem:[%s2] sm:$0xff]
    %v30 = vld [vmem:[%s2 + $0x8] sm:$0xff]
    %v31 = vld [vmem:[%s2 + $0x10] sm:$0xff]
    %v32 = vld [vmem:[%s2 + $0x18] sm:$0xff]
    %v33 = vld [vmem:[%s2 + $0x20] sm:$0xff]
    %v34 = vld [vmem:[%s2 + $0x28] sm:$0xff]
    %v35 = vld [vmem:[%s2 + $0x30] sm:$0xff]
    %v36 = vld [vmem:[%s2 + $0x38] sm:$0xff]
    %v37 = vld [vmem:[%s3] sm:$0xff]
    %v38 = vld [vmem:[%s3 + $0x8] sm:$0xff]
    %v39 = vld [vmem:[%s3 + $0x10] sm:$0xff]
    %v40 = vld [vmem:[%s3 + $0x18] sm:$0xff]
    %v41 = vld [vmem:[%s3 + $0x20] sm:$0xff]
    %v42 = vld [vmem:[%s3 + $0x28] sm:$0xff]
    %v43 = vld [vmem:[%s3 + $0x30] sm:$0xff]
    %v44 = vld [vmem:[%s3 + $0x38] sm:$0xff]
    %vm45 = vcmask 130048
    %v47 = vsel %vm45, %v28, 0
    %49 = vmatprep.subr.mxu0 0.0
    %50 = vmatpush1.msra.mxu0 0.0
    %51 = vmatprep.subr.mxu0 0.0
    %52 = vmatpush1.msra.mxu0 0.0
    %53 = vmatprep.subr.mxu0 0.0
    %54 = vmatpush1.msra.mxu0 0.0
    %55 = vmatprep.subr.mxu0 0.0
    %56 = vmatpush1.msra.mxu0 0.0
    %57 = vmatprep.subr.mxu0 0.0
    %58 = vmatpush1.msra.mxu0 0.0
    %59 = vmatprep.subr.mxu0 0.0
    %60 = vmatpush1.msra.mxu0 0.0
    %61 = vmatprep.subr.mxu0 0.0
    %62 = vmatpush1.msra.mxu0 0.0
    %63 = vmatprep.subr.mxu0 0.0
    %64 = vmatpush1.msra.mxu0 0.0
    %65 = vmatprep.subr.mxu0 0.0
    %66 = vmatpush1.msra.mxu0 0.0
    %67 = vmatprep.subr.mxu0 0.0
    %68 = vmatpush1.msra.mxu0 0.0
    %69 = vmatprep.subr.mxu0 0.0
    %70 = vmatpush1.msra.mxu0 0.0
    %71 = vmatprep.subr.mxu0 0.0
    %72 = vmatpush1.msra.mxu0 0.0
    %73 = vmatprep.subr.mxu0 0.0
    %74 = vmatpush1.msra.mxu0 0.0
    %75 = vmatprep.subr.mxu0 0.0
    %76 = vmatpush1.msra.mxu0 0.0
    %77 = vmatprep.subr.mxu0 %v42
    %78 = vmatpush1.msra.mxu0 %v41
    %79 = vmatprep.subr.mxu0 %v38
    %80 = vmatpush1.msra.mxu0 %v37
    %81 = vmatprep.subr.mxu0 0.0
    %82 = vmatpush2.msra.mxu0 0.0
    %83 = vmatprep.subr.mxu0 0.0
    %84 = vmatpush2.msra.mxu0 0.0
    %85 = vmatprep.subr.mxu0 0.0
    %86 = vmatpush2.msra.mxu0 0.0
    %87 = vmatprep.subr.mxu0 0.0
    %88 = vmatpush2.msra.mxu0 0.0
    %89 = vmatprep.subr.mxu0 0.0
    %90 = vmatpush2.msra.mxu0 0.0
    %91 = vmatprep.subr.mxu0 0.0
    %92 = vmatpush2.msra.mxu0 0.0
    %93 = vmatprep.subr.mxu0 0.0
    %94 = vmatpush2.msra.mxu0 0.0
    %95 = vmatprep.subr.mxu0 0.0
    %96 = vmatpush2.msra.mxu0 0.0
    %97 = vmatprep.subr.mxu0 0.0
    %98 = vmatpush2.msra.mxu0 0.0
    %99 = vmatprep.subr.mxu0 0.0
    %100 = vmatpush2.msra.mxu0 0.0
    %101 = vmatprep.subr.mxu0 0.0
    %102 = vmatpush2.msra.mxu0 0.0
    %103 = vmatprep.subr.mxu0 0.0
    %104 = vmatpush2.msra.mxu0 0.0
    %105 = vmatprep.subr.mxu0 0.0
    %106 = vmatpush2.msra.mxu0 0.0
    %107 = vmatprep.subr.mxu0 0.0
    %108 = vmatpush2.msra.mxu0 0.0
    %109 = vmatprep.subr.mxu0 0.0
    %110 = vmatpush2.msra.mxu0 0.0
    %111 = vmatprep.subr.mxu0 0.0
    %112 = vmatpush2.msra.mxu0 0.0
    %113 = vmatprep.mubr.f32.mxu0 0.0
    %114 = vmatmul.mubr.f32.gmra.mxu0 %v47
    %v115 = vpop.f32.mrf.mxu0
    %v116 = vadd.f32 0.0, %v115
    %v117 = vpop.f32.mrf.mxu0
    %v118 = vadd.f32 0.0, %v117
    %119 = vdwg.mxu0
    %120 = vmatprep.subr.mxu0 0.0
    %121 = vmatpush1.msra.mxu0 0.0
    %122 = vmatprep.subr.mxu0 0.0
    %123 = vmatpush1.msra.mxu0 0.0
    %124 = vmatprep.subr.mxu0 0.0
    %125 = vmatpush1.msra.mxu0 0.0
    %126 = vmatprep.subr.mxu0 0.0
    %127 = vmatpush1.msra.mxu0 0.0
    %128 = vmatprep.subr.mxu0 0.0
    %129 = vmatpush1.msra.mxu0 0.0
    %130 = vmatprep.subr.mxu0 0.0
    %131 = vmatpush1.msra.mxu0 0.0
    %132 = vmatprep.subr.mxu0 0.0
    %133 = vmatpush1.msra.mxu0 0.0
    %134 = vmatprep.subr.mxu0 0.0
    %135 = vmatpush1.msra.mxu0 0.0
    %136 = vmatprep.subr.mxu0 0.0
    %137 = vmatpush1.msra.mxu0 0.0
    %138 = vmatprep.subr.mxu0 0.0
    %139 = vmatpush1.msra.mxu0 0.0
    %140 = vmatprep.subr.mxu0 0.0
    %141 = vmatpush1.msra.mxu0 0.0
    %142 = vmatprep.subr.mxu0 0.0
    %143 = vmatpush1.msra.mxu0 0.0
    %144 = vmatprep.subr.mxu0 0.0
    %145 = vmatpush1.msra.mxu0 0.0
    %146 = vmatprep.subr.mxu0 0.0
    %147 = vmatpush1.msra.mxu0 0.0
    %148 = vmatprep.subr.mxu0 %v44
    %149 = vmatpush1.msra.mxu0 %v43
    %150 = vmatprep.subr.mxu0 %v40
    %151 = vmatpush1.msra.mxu0 %v39
    %152 = vmatprep.subr.mxu0 0.0
    %153 = vmatpush2.msra.mxu0 0.0
    %154 = vmatprep.subr.mxu0 0.0
    %155 = vmatpush2.msra.mxu0 0.0
    %156 = vmatprep.subr.mxu0 0.0
    %157 = vmatpush2.msra.mxu0 0.0
    %158 = vmatprep.subr.mxu0 0.0
    %159 = vmatpush2.msra.mxu0 0.0
    %160 = vmatprep.subr.mxu0 0.0
    %161 = vmatpush2.msra.mxu0 0.0
    %162 = vmatprep.subr.mxu0 0.0
    %163 = vmatpush2.msra.mxu0 0.0
    %164 = vmatprep.subr.mxu0 0.0
    %165 = vmatpush2.msra.mxu0 0.0
    %166 = vmatprep.subr.mxu0 0.0
    %167 = vmatpush2.msra.mxu0 0.0
    %168 = vmatprep.subr.mxu0 0.0
    %169 = vmatpush2.msra.mxu0 0.0
    %170 = vmatprep.subr.mxu0 0.0
    %171 = vmatpush2.msra.mxu0 0.0
    %172 = vmatprep.subr.mxu0 0.0
    %173 = vmatpush2.msra.mxu0 0.0
    %174 = vmatprep.subr.mxu0 0.0
    %175 = vmatpush2.msra.mxu0 0.0
    %176 = vmatprep.subr.mxu0 0.0
    %177 = vmatpush2.msra.mxu0 0.0
    %178 = vmatprep.subr.mxu0 0.0
    %179 = vmatpush2.msra.mxu0 0.0
    %180 = vmatprep.subr.mxu0 0.0
    %181 = vmatpush2.msra.mxu0 0.0
    %182 = vmatprep.subr.mxu0 0.0
    %183 = vmatpush2.msra.mxu0 0.0
    %184 = vmatprep.mubr.f32.mxu0 0.0
    %185 = vmatmul.mubr.f32.gmra.mxu0 %v47
    %v186 = vpop.f32.mrf.mxu0
    %v187 = vadd.f32 0.0, %v186
    %v188 = vpop.f32.mrf.mxu0
    %v189 = vadd.f32 0.0, %v188
    %190 = vdwg.mxu0
    %v192 = vsel %vm45, %v27, 0
    %194 = vmatprep.subr.mxu0 0.0
    %195 = vmatpush1.msra.mxu0 0.0
    %196 = vmatprep.subr.mxu0 0.0
    %197 = vmatpush1.msra.mxu0 0.0
    %198 = vmatprep.subr.mxu0 0.0
    %199 = vmatpush1.msra.mxu0 0.0
    %200 = vmatprep.subr.mxu0 0.0
    %201 = vmatpush1.msra.mxu0 0.0
    %202 = vmatprep.subr.mxu0 0.0
    %203 = vmatpush1.msra.mxu0 0.0
    %204 = vmatprep.subr.mxu0 0.0
    %205 = vmatpush1.msra.mxu0 0.0
    %206 = vmatprep.subr.mxu0 0.0
    %207 = vmatpush1.msra.mxu0 0.0
    %208 = vmatprep.subr.mxu0 0.0
    %209 = vmatpush1.msra.mxu0 0.0
    %210 = vmatprep.subr.mxu0 0.0
    %211 = vmatpush1.msra.mxu0 0.0
    %212 = vmatprep.subr.mxu0 0.0
    %213 = vmatpush1.msra.mxu0 0.0
    %214 = vmatprep.subr.mxu0 0.0
    %215 = vmatpush1.msra.mxu0 0.0
    %216 = vmatprep.subr.mxu0 0.0
    %217 = vmatpush1.msra.mxu0 0.0
    %218 = vmatprep.subr.mxu0 0.0
    %219 = vmatpush1.msra.mxu0 0.0
    %220 = vmatprep.subr.mxu0 0.0
    %221 = vmatpush1.msra.mxu0 0.0
    %222 = vmatprep.subr.mxu0 %v34
    %223 = vmatpush1.msra.mxu0 %v33
    %224 = vmatprep.subr.mxu0 %v30
    %225 = vmatpush1.msra.mxu0 %v29
    %226 = vmatprep.subr.mxu0 0.0
    %227 = vmatpush2.msra.mxu0 0.0
    %228 = vmatprep.subr.mxu0 0.0
    %229 = vmatpush2.msra.mxu0 0.0
    %230 = vmatprep.subr.mxu0 0.0
    %231 = vmatpush2.msra.mxu0 0.0
    %232 = vmatprep.subr.mxu0 0.0
    %233 = vmatpush2.msra.mxu0 0.0
    %234 = vmatprep.subr.mxu0 0.0
    %235 = vmatpush2.msra.mxu0 0.0
    %236 = vmatprep.subr.mxu0 0.0
    %237 = vmatpush2.msra.mxu0 0.0
    %238 = vmatprep.subr.mxu0 0.0
    %239 = vmatpush2.msra.mxu0 0.0
    %240 = vmatprep.subr.mxu0 0.0
    %241 = vmatpush2.msra.mxu0 0.0
    %242 = vmatprep.subr.mxu0 0.0
    %243 = vmatpush2.msra.mxu0 0.0
    %244 = vmatprep.subr.mxu0 0.0
    %245 = vmatpush2.msra.mxu0 0.0
    %246 = vmatprep.subr.mxu0 0.0
    %247 = vmatpush2.msra.mxu0 0.0
    %248 = vmatprep.subr.mxu0 0.0
    %249 = vmatpush2.msra.mxu0 0.0
    %250 = vmatprep.subr.mxu0 0.0
    %251 = vmatpush2.msra.mxu0 0.0
    %252 = vmatprep.subr.mxu0 0.0
    %253 = vmatpush2.msra.mxu0 0.0
    %254 = vmatprep.subr.mxu0 0.0
    %255 = vmatpush2.msra.mxu0 0.0
    %256 = vmatprep.subr.mxu0 0.0
    %257 = vmatpush2.msra.mxu0 0.0
    %258 = vmatprep.mubr.f32.mxu0 0.0
    %259 = vmatmul.mubr.f32.gmra.mxu0 %v192
    %v260 = vpop.f32.mrf.mxu0
    %v261 = vadd.f32 %v116, %v260
    %v262 = vpop.f32.mrf.mxu0
    %v263 = vadd.f32 %v118, %v262
    %264 = vdwg.mxu0
    %265 = vmatprep.subr.mxu0 0.0
    %266 = vmatpush1.msra.mxu0 0.0
    %267 = vmatprep.subr.mxu0 0.0
    %268 = vmatpush1.msra.mxu0 0.0
    %269 = vmatprep.subr.mxu0 0.0
    %270 = vmatpush1.msra.mxu0 0.0
    %271 = vmatprep.subr.mxu0 0.0
    %272 = vmatpush1.msra.mxu0 0.0
    %273 = vmatprep.subr.mxu0 0.0
    %274 = vmatpush1.msra.mxu0 0.0
    %275 = vmatprep.subr.mxu0 0.0
    %276 = vmatpush1.msra.mxu0 0.0
    %277 = vmatprep.subr.mxu0 0.0
    %278 = vmatpush1.msra.mxu0 0.0
    %279 = vmatprep.subr.mxu0 0.0
    %280 = vmatpush1.msra.mxu0 0.0
    %281 = vmatprep.subr.mxu0 0.0
    %282 = vmatpush1.msra.mxu0 0.0
    %283 = vmatprep.subr.mxu0 0.0
    %284 = vmatpush1.msra.mxu0 0.0
    %285 = vmatprep.subr.mxu0 0.0
    %286 = vmatpush1.msra.mxu0 0.0
    %287 = vmatprep.subr.mxu0 0.0
    %288 = vmatpush1.msra.mxu0 0.0
    %289 = vmatprep.subr.mxu0 0.0
    %290 = vmatpush1.msra.mxu0 0.0
    %291 = vmatprep.subr.mxu0 0.0
    %292 = vmatpush1.msra.mxu0 0.0
    %293 = vmatprep.subr.mxu0 %v36
    %294 = vmatpush1.msra.mxu0 %v35
    %295 = vmatprep.subr.mxu0 %v32
    %296 = vmatpush1.msra.mxu0 %v31
    %297 = vmatprep.subr.mxu0 0.0
    %298 = vmatpush2.msra.mxu0 0.0
    %299 = vmatprep.subr.mxu0 0.0
    %300 = vmatpush2.msra.mxu0 0.0
    %301 = vmatprep.subr.mxu0 0.0
    %302 = vmatpush2.msra.mxu0 0.0
    %303 = vmatprep.subr.mxu0 0.0
    %304 = vmatpush2.msra.mxu0 0.0
    %305 = vmatprep.subr.mxu0 0.0
    %306 = vmatpush2.msra.mxu0 0.0
    %307 = vmatprep.subr.mxu0 0.0
    %308 = vmatpush2.msra.mxu0 0.0
    %309 = vmatprep.subr.mxu0 0.0
    %310 = vmatpush2.msra.mxu0 0.0
    %311 = vmatprep.subr.mxu0 0.0
    %312 = vmatpush2.msra.mxu0 0.0
    %313 = vmatprep.subr.mxu0 0.0
    %314 = vmatpush2.msra.mxu0 0.0
    %315 = vmatprep.subr.mxu0 0.0
    %316 = vmatpush2.msra.mxu0 0.0
    %317 = vmatprep.subr.mxu0 0.0
    %318 = vmatpush2.msra.mxu0 0.0
    %319 = vmatprep.subr.mxu0 0.0
    %320 = vmatpush2.msra.mxu0 0.0
    %321 = vmatprep.subr.mxu0 0.0
    %322 = vmatpush2.msra.mxu0 0.0
    %323 = vmatprep.subr.mxu0 0.0
    %324 = vmatpush2.msra.mxu0 0.0
    %325 = vmatprep.subr.mxu0 0.0
    %326 = vmatpush2.msra.mxu0 0.0
    %327 = vmatprep.subr.mxu0 0.0
    %328 = vmatpush2.msra.mxu0 0.0
    %329 = vmatprep.mubr.f32.mxu0 0.0
    %330 = vmatmul.mubr.f32.gmra.mxu0 %v192
    %v331 = vpop.f32.mrf.mxu0
    %v332 = vadd.f32 %v187, %v331
    %v333 = vpop.f32.mrf.mxu0
    %v334 = vadd.f32 %v189, %v333
    %335 = vdwg.mxu0
    %v336 = vld [vmem:[%s4] sm:$0xf]
    %v338 = vlaneseq
    %v339 = vshrl.u32 %v338, 7
    %v340 = vsub.s32 0, %v339
    %v341 = vrot.slane %v336, %v340
    %v342 = vlaneseq
    %v343 = vshrl.u32 %v342, 7
    %v344 = vsub.s32 1, %v343
    %v345 = vrot.slane %v336, %v344
    %v346 = vlaneseq
    %v347 = vshrl.u32 %v346, 7
    %v348 = vsub.s32 2, %v347
    %v349 = vrot.slane %v336, %v348
    %v350 = vlaneseq
    %v351 = vshrl.u32 %v350, 7
    %v352 = vsub.s32 3, %v351
    %v353 = vrot.slane %v336, %v352
    %v358 = vadd.f32 %v261, %v341
    %v359 = vadd.f32 %v263, %v345
    %v360 = vadd.f32 %v332, %v349
    %v361 = vadd.f32 %v334, %v353
    %v362 = vtanh.pop %v358
    %v363 = vtanh.pop %v359
    %v364 = vtanh.pop %v360
    %v365 = vtanh.pop %v361
    %v366 = vld [vmem:[%s5] sm:$0xff]
    %v367 = vld [vmem:[%s5 + $0x8] sm:$0xff]
    %v368 = vld [vmem:[%s5 + $0x10] sm:$0xff]
    %v369 = vld [vmem:[%s5 + $0x18] sm:$0xff]
    %v370 = vld [vmem:[%s5 + $0x20] sm:$0xff]
    %v371 = vld [vmem:[%s5 + $0x28] sm:$0xff]
    %v372 = vld [vmem:[%s5 + $0x30] sm:$0xff]
    %v373 = vld [vmem:[%s5 + $0x38] sm:$0xff]
    %v374 = vld [vmem:[%s5 + $0x40] sm:$0xff]
    %v375 = vld [vmem:[%s5 + $0x48] sm:$0xff]
    %v376 = vld [vmem:[%s5 + $0x50] sm:$0xff]
    %v377 = vld [vmem:[%s5 + $0x58] sm:$0xff]
    %v378 = vld [vmem:[%s5 + $0x60] sm:$0xff]
    %v379 = vld [vmem:[%s5 + $0x68] sm:$0xff]
    %v380 = vld [vmem:[%s5 + $0x70] sm:$0xff]
    %v381 = vld [vmem:[%s5 + $0x78] sm:$0xff]
    %v382 = vld [vmem:[%s5 + $0x80] sm:$0xff]
    %v383 = vld [vmem:[%s5 + $0x88] sm:$0xff]
    %v384 = vld [vmem:[%s5 + $0x90] sm:$0xff]
    %v385 = vld [vmem:[%s5 + $0x98] sm:$0xff]
    %v386 = vld [vmem:[%s5 + $0xa0] sm:$0xff]
    %v387 = vld [vmem:[%s5 + $0xa8] sm:$0xff]
    %v388 = vld [vmem:[%s5 + $0xb0] sm:$0xff]
    %v389 = vld [vmem:[%s5 + $0xb8] sm:$0xff]
    %v390 = vld [vmem:[%s5 + $0xc0] sm:$0xff]
    %v391 = vld [vmem:[%s5 + $0xc8] sm:$0xff]
    %v392 = vld [vmem:[%s5 + $0xd0] sm:$0xff]
    %v393 = vld [vmem:[%s5 + $0xd8] sm:$0xff]
    %v394 = vld [vmem:[%s5 + $0xe0] sm:$0xff]
    %v395 = vld [vmem:[%s5 + $0xe8] sm:$0xff]
    %v396 = vld [vmem:[%s5 + $0xf0] sm:$0xff]
    %v397 = vld [vmem:[%s5 + $0xf8] sm:$0xff]
    %v398 = vld [vmem:[%s5 + $0x100] sm:$0xff]
    %v399 = vld [vmem:[%s5 + $0x108] sm:$0xff]
    %v400 = vld [vmem:[%s5 + $0x110] sm:$0xff]
    %v401 = vld [vmem:[%s5 + $0x118] sm:$0xff]
    %v402 = vld [vmem:[%s5 + $0x120] sm:$0xff]
    %v403 = vld [vmem:[%s5 + $0x128] sm:$0xff]
    %v404 = vld [vmem:[%s5 + $0x130] sm:$0xff]
    %v405 = vld [vmem:[%s5 + $0x138] sm:$0xff]
    %v406 = vld [vmem:[%s5 + $0x140] sm:$0xff]
    %v407 = vld [vmem:[%s5 + $0x148] sm:$0xff]
    %v408 = vld [vmem:[%s5 + $0x150] sm:$0xff]
    %v409 = vld [vmem:[%s5 + $0x158] sm:$0xff]
    %v410 = vld [vmem:[%s5 + $0x160] sm:$0xff]
    %v411 = vld [vmem:[%s5 + $0x168] sm:$0xff]
    %v412 = vld [vmem:[%s5 + $0x170] sm:$0xff]
    %v413 = vld [vmem:[%s5 + $0x178] sm:$0xff]
    %v414 = vld [vmem:[%s5 + $0x180] sm:$0xff]
    %v415 = vld [vmem:[%s5 + $0x188] sm:$0xff]
    %v416 = vld [vmem:[%s5 + $0x190] sm:$0xff]
    %v417 = vld [vmem:[%s5 + $0x198] sm:$0xff]
    %v418 = vld [vmem:[%s5 + $0x1a0] sm:$0xff]
    %v419 = vld [vmem:[%s5 + $0x1a8] sm:$0xff]
    %v420 = vld [vmem:[%s5 + $0x1b0] sm:$0xff]
    %v421 = vld [vmem:[%s5 + $0x1b8] sm:$0xff]
    %v422 = vld [vmem:[%s5 + $0x1c0] sm:$0xff]
    %v423 = vld [vmem:[%s5 + $0x1c8] sm:$0xff]
    %v424 = vld [vmem:[%s5 + $0x1d0] sm:$0xff]
    %v425 = vld [vmem:[%s5 + $0x1d8] sm:$0xff]
    %v426 = vld [vmem:[%s5 + $0x1e0] sm:$0xff]
    %v427 = vld [vmem:[%s5 + $0x1e8] sm:$0xff]
    %v428 = vld [vmem:[%s5 + $0x1f0] sm:$0xff]
    %v429 = vld [vmem:[%s5 + $0x1f8] sm:$0xff]
    %v430 = vld [vmem:[%s6] sm:$0x1]
    %v432 = vlaneseq
    %v433 = vshrl.u32 %v432, 7
    %v434 = vsub.s32 0, %v433
    %v435 = vrot.slane %v430, %v434
    %437 = vmatprep.subr.mxu0 0.0
    %438 = vmatpush1.msra.mxu0 %v381
    %439 = vmatprep.subr.mxu0 0.0
    %440 = vmatpush1.msra.mxu0 %v380
    %441 = vmatprep.subr.mxu0 0.0
    %442 = vmatpush1.msra.mxu0 %v379
    %443 = vmatprep.subr.mxu0 0.0
    %444 = vmatpush1.msra.mxu0 %v378
    %445 = vmatprep.subr.mxu0 0.0
    %446 = vmatpush1.msra.mxu0 %v377
    %447 = vmatprep.subr.mxu0 0.0
    %448 = vmatpush1.msra.mxu0 %v376
    %449 = vmatprep.subr.mxu0 0.0
    %450 = vmatpush1.msra.mxu0 %v375
    %451 = vmatprep.subr.mxu0 0.0
    %452 = vmatpush1.msra.mxu0 %v374
    %453 = vmatprep.subr.mxu0 0.0
    %454 = vmatpush1.msra.mxu0 %v373
    %455 = vmatprep.subr.mxu0 0.0
    %456 = vmatpush1.msra.mxu0 %v372
    %457 = vmatprep.subr.mxu0 0.0
    %458 = vmatpush1.msra.mxu0 %v371
    %459 = vmatprep.subr.mxu0 0.0
    %460 = vmatpush1.msra.mxu0 %v370
    %461 = vmatprep.subr.mxu0 0.0
    %462 = vmatpush1.msra.mxu0 %v369
    %463 = vmatprep.subr.mxu0 0.0
    %464 = vmatpush1.msra.mxu0 %v368
    %465 = vmatprep.subr.mxu0 0.0
    %466 = vmatpush1.msra.mxu0 %v367
    %467 = vmatprep.subr.mxu0 0.0
    %468 = vmatpush1.msra.mxu0 %v366
    %469 = vmatprep.subr.mxu0 0.0
    %470 = vmatpush2.msra.mxu0 %v397
    %471 = vmatprep.subr.mxu0 0.0
    %472 = vmatpush2.msra.mxu0 %v396
    %473 = vmatprep.subr.mxu0 0.0
    %474 = vmatpush2.msra.mxu0 %v395
    %475 = vmatprep.subr.mxu0 0.0
    %476 = vmatpush2.msra.mxu0 %v394
    %477 = vmatprep.subr.mxu0 0.0
    %478 = vmatpush2.msra.mxu0 %v393
    %479 = vmatprep.subr.mxu0 0.0
    %480 = vmatpush2.msra.mxu0 %v392
    %481 = vmatprep.subr.mxu0 0.0
    %482 = vmatpush2.msra.mxu0 %v391
    %483 = vmatprep.subr.mxu0 0.0
    %484 = vmatpush2.msra.mxu0 %v390
    %485 = vmatprep.subr.mxu0 0.0
    %486 = vmatpush2.msra.mxu0 %v389
    %487 = vmatprep.subr.mxu0 0.0
    %488 = vmatpush2.msra.mxu0 %v388
    %489 = vmatprep.subr.mxu0 0.0
    %490 = vmatpush2.msra.mxu0 %v387
    %491 = vmatprep.subr.mxu0 0.0
    %492 = vmatpush2.msra.mxu0 %v386
    %493 = vmatprep.subr.mxu0 0.0
    %494 = vmatpush2.msra.mxu0 %v385
    %495 = vmatprep.subr.mxu0 0.0
    %496 = vmatpush2.msra.mxu0 %v384
    %497 = vmatprep.subr.mxu0 0.0
    %498 = vmatpush2.msra.mxu0 %v383
    %499 = vmatprep.subr.mxu0 0.0
    %500 = vmatpush2.msra.mxu0 %v382
    %501 = vmatprep.mubr.f32.mxu0 %v363
    %502 = vmatmul.mubr.f32.gmra.mxu0 %v362
    %v503 = vpop.f32.mrf.mxu0
    %v504 = vadd.f32 %v435, %v503
    %v505 = vpop.f32.mrf.mxu0
    %506 = vdwg.mxu0
    %507 = vmatprep.subr.mxu0 0.0
    %508 = vmatpush1.msra.mxu0 %v413
    %509 = vmatprep.subr.mxu0 0.0
    %510 = vmatpush1.msra.mxu0 %v412
    %511 = vmatprep.subr.mxu0 0.0
    %512 = vmatpush1.msra.mxu0 %v411
    %513 = vmatprep.subr.mxu0 0.0
    %514 = vmatpush1.msra.mxu0 %v410
    %515 = vmatprep.subr.mxu0 0.0
    %516 = vmatpush1.msra.mxu0 %v409
    %517 = vmatprep.subr.mxu0 0.0
    %518 = vmatpush1.msra.mxu0 %v408
    %519 = vmatprep.subr.mxu0 0.0
    %520 = vmatpush1.msra.mxu0 %v407
    %521 = vmatprep.subr.mxu0 0.0
    %522 = vmatpush1.msra.mxu0 %v406
    %523 = vmatprep.subr.mxu0 0.0
    %524 = vmatpush1.msra.mxu0 %v405
    %525 = vmatprep.subr.mxu0 0.0
    %526 = vmatpush1.msra.mxu0 %v404
    %527 = vmatprep.subr.mxu0 0.0
    %528 = vmatpush1.msra.mxu0 %v403
    %529 = vmatprep.subr.mxu0 0.0
    %530 = vmatpush1.msra.mxu0 %v402
    %531 = vmatprep.subr.mxu0 0.0
    %532 = vmatpush1.msra.mxu0 %v401
    %533 = vmatprep.subr.mxu0 0.0
    %534 = vmatpush1.msra.mxu0 %v400
    %535 = vmatprep.subr.mxu0 0.0
    %536 = vmatpush1.msra.mxu0 %v399
    %537 = vmatprep.subr.mxu0 0.0
    %538 = vmatpush1.msra.mxu0 %v398
    %539 = vmatprep.subr.mxu0 0.0
    %540 = vmatpush2.msra.mxu0 %v429
    %541 = vmatprep.subr.mxu0 0.0
    %542 = vmatpush2.msra.mxu0 %v428
    %543 = vmatprep.subr.mxu0 0.0
    %544 = vmatpush2.msra.mxu0 %v427
    %545 = vmatprep.subr.mxu0 0.0
    %546 = vmatpush2.msra.mxu0 %v426
    %547 = vmatprep.subr.mxu0 0.0
    %548 = vmatpush2.msra.mxu0 %v425
    %549 = vmatprep.subr.mxu0 0.0
    %550 = vmatpush2.msra.mxu0 %v424
    %551 = vmatprep.subr.mxu0 0.0
    %552 = vmatpush2.msra.mxu0 %v423
    %553 = vmatprep.subr.mxu0 0.0
    %554 = vmatpush2.msra.mxu0 %v422
    %555 = vmatprep.subr.mxu0 0.0
    %556 = vmatpush2.msra.mxu0 %v421
    %557 = vmatprep.subr.mxu0 0.0
    %558 = vmatpush2.msra.mxu0 %v420
    %559 = vmatprep.subr.mxu0 0.0
    %560 = vmatpush2.msra.mxu0 %v419
    %561 = vmatprep.subr.mxu0 0.0
    %562 = vmatpush2.msra.mxu0 %v418
    %563 = vmatprep.subr.mxu0 0.0
    %564 = vmatpush2.msra.mxu0 %v417
    %565 = vmatprep.subr.mxu0 0.0
    %566 = vmatpush2.msra.mxu0 %v416
    %567 = vmatprep.subr.mxu0 0.0
    %568 = vmatpush2.msra.mxu0 %v415
    %569 = vmatprep.subr.mxu0 0.0
    %570 = vmatpush2.msra.mxu0 %v414
    %571 = vmatprep.mubr.f32.mxu0 %v365
    %572 = vmatmul.mubr.f32.gmra.mxu0 %v364
    %v573 = vpop.f32.mrf.mxu0
    %v574 = vadd.f32 %v504, %v573
    %v575 = vpop.f32.mrf.mxu0
    %576 = vdwg.mxu0
    %vm577 = vcmask 31744
    %v578 = vsel %vm577, %v574, -inf
    %579 = vmax.xlane.f32.xlu0 %v578
    %v580 = vpop.xlane.xlu0 %579
    %v581 = vsub.f32 %v574, %v580
    %v582 = vmul.f32 %v581, 1.442695
    %v583 = vpow.pop %v582
    %v584 = vsel %vm577, %v583, 0.0
    %585 = vadd.xlane.f32.xlu0 %v584
    %v586 = vpop.xlane.xlu0 %585
    %v587 = vrcp.pop %v586
    %v588 = vmul.f32 %v583, %v587
    %v589 = vsel %vm577, %v588, 0.0
    %590 = vadd.xlane.f32.xlu0 %v589
    %v591 = vpop.xlane.xlu0 %590
    %v592 = vmul.f32 %v27, %v591
    %593 = vst.msk [vmem:[#allocation2] sm:$0xff] %vm45, %v592
    %v594 = vmul.f32 %v28, %v591
    %596 = vrot.lane.b32.xlu0 %v594, 16
    %v597 = vpop.permute.xlu0 %596
    %vm599 = vcmask 261248
    %600 = vst.msk [vmem:[#allocation2] sm:$0xff] %vm599, %v597
    // Predicated region
    $region30: #{tpu_custom_call.1} parent=1 // pred_check
      _
    $region31: #{tpu_custom_call.1} parent=1 // pred_check_branch
      %602 = sbr.rel (0) target = $region33
    $region32: #{tpu_custom_call.1} parent=1 // pred_region
      %s604 = ssub.s32 128, 128
      %605 = vsyncadd [#allocation3], %s604
      %s607 = sshll.u32 [#allocation2], 4
      %s608 = int_to_ptr.vmem [resolvable:$true] %s607
      %610 = dma.vmem_to_hbm [thread:$0]  %s608, 128, %s7, [#allocation3]
    $region33: #{tpu_custom_call.1} parent=1 // pred_fallthru
      _
    // Predicated region
    $region34: #{tpu_custom_call.1} parent=1 // pred_check
      _
    $region35: #{tpu_custom_call.1} parent=1 // pred_check_branch
      %612 = sbr.rel (0) target = $region37
    $region36: #{tpu_custom_call.1} parent=1 // pred_region
      %613 = dma.done [#allocation3], 128
    $region37: #{tpu_custom_call.1} parent=1 // pred_fallthru
      _
    %614 = vsyncpa [#allocation3], 1

</llo_original>
